<compile_context>
chip_gen: v7x
topology: tpu7x:2x2x1
jax: 0.10.0
libtpu: 0.0.40
codegen_flags: <defaults>
</compile_context>

<pallas_src>
import functools

import jax
import jax.numpy as jnp
from jax.experimental import pallas as pl
from jax.experimental.pallas import tpu as pltpu

_LANE = 128
_SUBLANE = 8
_MAX_BLOCK_ROWS = 4096   # 4096 x 128 f32 = 2 MiB / block; x2 buffering = 4 MiB
_CHUNK_ROWS = 128        # inner-loop chunk: 128 x 128 f32 = 16 vregs live


def _round_up(x, m):
    return ((x + m - 1) // m) * m


def _cdiv(a, b):
    return -(-a // b)


def _make_adv_loss_kernel(*, block_rows, chunk_rows, n_chunks, n_rows,
                          n_blocks, n_splits, steps, needs_mask):
    """Builds the kernel; all sizing parameters are static Python ints."""

    def kernel(x_ref, out_ref, acc_ref):
        s = pl.program_id(0)
        j = pl.program_id(1)
        block_idx = s * steps + j   # logical block of the [rows, 128] slab

        @pl.when(j == 0)
        def _init():
            acc_ref[...] = jnp.zeros_like(acc_ref)

        def process_chunk(x, base_row, mask_rows):
            x = x.astype(jnp.float32)
            # sigmoid(x) == 0.5*tanh(0.5*x) + 0.5 : one EUP push per element.
            sig = 0.5 * jnp.tanh(0.5 * x) + 0.5
            val = jnp.log(sig + 1e-9)
            if mask_rows:
                row_ids = (block_idx * block_rows + base_row
                           + jax.lax.broadcasted_iota(
                               jnp.int32, (chunk_rows, _LANE), 0))
                val = jnp.where(row_ids < n_rows, val, 0.0)
            # Pure VPU accumulation into an (8,128) vreg-shaped accumulator;
            # the cross-lane reduce is deferred to the tiny wrapper sum.
            acc_ref[...] += jnp.sum(
                val.reshape(chunk_rows // _SUBLANE, _SUBLANE, _LANE), axis=0)

        def accumulate_block(mask_rows):
            if n_chunks == 1:
                process_chunk(x_ref[...], 0, mask_rows)
            else:
                def body(c, carry):
                    r0 = pl.multiple_of(c * chunk_rows, chunk_rows)
                    process_chunk(x_ref[pl.ds(r0, chunk_rows), :],
                                  c * chunk_rows, mask_rows)
                    return carry
                jax.lax.fori_loop(0, n_chunks, body, 0)

        if needs_mask:
            # Only the last real block can be row-partial; full blocks skip
            # the iota/compare/select entirely.
            @pl.when(block_idx < n_blocks - 1)
            def _full():
                accumulate_block(False)

            @pl.when(block_idx == n_blocks - 1)
            def _last():
                accumulate_block(True)
        else:
            if n_splits * steps == n_blocks:
                accumulate_block(False)
            else:
                # Guard phantom grid positions (odd block count on 2 splits).
                @pl.when(block_idx < n_blocks)
                def _full():
                    accumulate_block(False)

        @pl.when(j == steps - 1)
        def _finalize():
            out_ref[...] = acc_ref[...].reshape(1, _SUBLANE, _LANE)

    return kernel


def _log_sigmoid_eps(x):
    x = x.astype(jnp.float32)
    return jnp.log(0.5 * jnp.tanh(0.5 * x) + 0.5 + 1e-9)


@functools.partial(jax.jit, static_argnames=("size",))
def adv_loss(p_y, size=256, weight=1.0):
    """Pallas implementation of Adv_loss.forward(P_Y)."""
    n_valid = p_y.size                  # static at trace time
    flat = p_y.reshape(-1)              # keep native dtype; cast inside kernel

    rows = n_valid // _LANE
    rem = n_valid % _LANE

    # <128 leftover elements: tiny slice summed outside the kernel so the bulk
    # of the input never needs padding.
    tail_sum = jnp.float32(0.0)
    if rem:
        tail = jax.lax.slice(flat, (rows * _LANE,), (n_valid,))
        tail_sum = jnp.sum(_log_sigmoid_eps(tail))

    if rows == 0:
        total_sum = tail_sum
    else:
        if rem:
            # Uncommon path (numel not a multiple of 128): one copy of the
            # lane-aligned prefix.  The common case below is a free reshape.
            main = jax.lax.slice(flat, (0,), (rows * _LANE,))
        else:
            main = flat
        x2d = main.reshape(rows, _LANE)

        # Block sizing: big blocks, chunk-divisible, no full-array padding.
        block_rows = min(_MAX_BLOCK_ROWS, _round_up(rows, _SUBLANE))
        if block_rows > _CHUNK_ROWS:
            block_rows = _round_up(block_rows, _CHUNK_ROWS)
        chunk_rows = min(_CHUNK_ROWS, block_rows)
        n_chunks = block_rows // chunk_rows
        n_blocks = _cdiv(rows, block_rows)
        needs_mask = (rows % block_rows) != 0

        # Megacore split across 2 TensorCores (v7x) whenever there are >= 2
        # blocks, even for odd counts (phantom steps guarded in-kernel).
        n_splits = 2 if n_blocks >= 2 else 1
        steps = _cdiv(n_blocks, n_splits)

        kernel = _make_adv_loss_kernel(
            block_rows=block_rows, chunk_rows=chunk_rows, n_chunks=n_chunks,
            n_rows=rows, n_blocks=n_blocks, n_splits=n_splits, steps=steps,
            needs_mask=needs_mask)

        n_kernel_elems = rows * _LANE
        cost = pl.CostEstimate(
            flops=6 * n_kernel_elems,
            transcendentals=2 * n_kernel_elems,
            bytes_accessed=(n_kernel_elems * x2d.dtype.itemsize
                            + n_splits * _SUBLANE * _LANE * 4),
        )

        partials = pl.pallas_call(
            kernel,
            out_shape=jax.ShapeDtypeStruct((n_splits, _SUBLANE, _LANE),
                                           jnp.float32),
            grid_spec=pltpu.PrefetchScalarGridSpec(
                num_scalar_prefetch=0,
                grid=(n_splits, steps),
                in_specs=[
                    pl.BlockSpec(
                        (block_rows, _LANE),
                        # Clamp so phantom positions never request an
                        # out-of-range block (their accumulate is guarded).
                        lambda s, j: (jnp.minimum(s * steps + j, n_blocks - 1),
                                      0)),
                ],
                out_specs=pl.BlockSpec((1, _SUBLANE, _LANE),
                                       lambda s, j: (s, 0, 0)),
                scratch_shapes=[pltpu.VMEM((_SUBLANE, _LANE), jnp.float32)],
            ),
            compiler_params=pltpu.CompilerParams(
                dimension_semantics=("parallel", "arbitrary"),
            ),
            cost_estimate=cost,
        )(x2d)

        total_sum = jnp.sum(partials) + tail_sum

    mean_val = total_sum / jnp.float32(n_valid)
    return (-weight) * 12.0 * (size * size) * mean_val


def adv_loss_ref(p_y, size=256, weight=1.0):
    """Pure-JAX reference matching the PyTorch forward."""
    x = p_y.astype(jnp.float32)
    return -weight * 12.0 * size * size * jnp.mean(
        jnp.log(jax.nn.sigmoid(x) + 1e-9))


if __name__ == "__main__":
    key = jax.random.PRNGKey(0)

    # Primary small discriminator-output-like shape, NCHW.
    p_y = jax.random.normal(key, (2, 4, 16, 16), dtype=jnp.float32)
    size, weight = 16, 1.0

    out = jax.block_until_ready(adv_loss(p_y, size=size, weight=weight))
    ref = adv_loss_ref(p_y, size=size, weight=weight)
    assert jnp.allclose(out, ref, rtol=1e-5, atol=1e-2), (out, ref)

    # Ragged shape (numel not a multiple of 128): exercises the in-kernel row
    # mask and the lane-tail path.
    p_y2 = jax.random.normal(jax.random.PRNGKey(1), (3, 5, 33, 17),
                             dtype=jnp.float32)
    out2 = jax.block_until_ready(adv_loss(p_y2, size=16, weight=0.5))
    ref2 = adv_loss_ref(p_y2, size=16, weight=0.5)
    assert jnp.allclose(out2, ref2, rtol=1e-5, atol=1e-2), (out2, ref2)

    # Multi-block shape: exercises the chunked inner loop, the 2-way
    # TensorCore split and the masked last block.
    p_y3 = jax.random.normal(jax.random.PRNGKey(2), (4, 3, 250, 250),
                             dtype=jnp.float32)
    out3 = jax.block_until_ready(adv_loss(p_y3, size=16, weight=1.0))
    ref3 = adv_loss_ref(p_y3, size=16, weight=1.0)
    assert jnp.allclose(out3, ref3, rtol=1e-5, atol=1e-2), (out3, ref3)

    print("KERNEL_OK")
</pallas_src>

<mosaic_0001>
module attributes {stable_mosaic.version = 11 : i64} {
  func.func @kernel(%arg0: i32, %arg1: i32, %arg2: memref<16x128xf32, #tpu.memory_space<vmem>>, %arg3: memref<1x8x128xf32, #tpu.memory_space<vmem>>, %arg4: memref<8x128xf32, #tpu.memory_space<vmem>>) attributes {dimension_semantics = [#tpu.dimension_semantics<parallel>, #tpu.dimension_semantics<arbitrary>], iteration_bounds = array<i64: 1, 1>, scalar_prefetch = 0 : i64, scratch_operands = 1 : i64, tpu.core_type = #tpu.core_type<tc>, window_params = [{transform_indices = @transform_0, window_bounds = array<i64: 16, 128>}, {transform_indices = @transform_1, window_bounds = array<i64: 1, 8, 128>}]} {
    %c0_i32 = arith.constant 0 : i32
    %0 = arith.cmpi eq, %arg1, %c0_i32 : i32
    %1 = arith.extui %0 : i1 to i32
    %c0_i32_0 = arith.constant 0 : i32
    %2 = arith.cmpi ne, %1, %c0_i32_0 : i32
    scf.if %2 {
      %cst_12 = arith.constant 0.000000e+00 : f32
      %22 = vector.broadcast %cst_12 : f32 to vector<8x128xf32>
      %c0_13 = arith.constant 0 : index
      %c0_14 = arith.constant 0 : index
      %23 = vector.load %arg4[%c0_13, %c0_14] : memref<8x128xf32, #tpu.memory_space<vmem>>, vector<8x128xf32>
      tpu.vector_store %arg4[%c0_13, %c0_14], %22 {strides = array<i32>} : memref<8x128xf32, #tpu.memory_space<vmem>>, vector<8x128xf32>,
    } else {
    }
    %c0 = arith.constant 0 : index
    %c0_1 = arith.constant 0 : index
    %3 = vector.load %arg2[%c0, %c0_1] : memref<16x128xf32, #tpu.memory_space<vmem>>, vector<16x128xf32>
    %cst = arith.constant 5.000000e-01 : f32
    %4 = vector.broadcast %cst : f32 to vector<16x128xf32>
    %5 = arith.mulf %4, %3 : vector<16x128xf32>
    %6 = math.tanh %5 : vector<16x128xf32>
    %cst_2 = arith.constant 5.000000e-01 : f32
    %7 = vector.broadcast %cst_2 : f32 to vector<16x128xf32>
    %8 = arith.mulf %7, %6 : vector<16x128xf32>
    %cst_3 = arith.constant 5.000000e-01 : f32
    %9 = vector.broadcast %cst_3 : f32 to vector<16x128xf32>
    %10 = arith.addf %8, %9 : vector<16x128xf32>
    %cst_4 = arith.constant 9.99999971E-10 : f32
    %11 = vector.broadcast %cst_4 : f32 to vector<16x128xf32>
    %12 = arith.addf %10, %11 : vector<16x128xf32>
    %13 = math.log %12 : vector<16x128xf32>
    %c0_5 = arith.constant 0 : index
    %c0_6 = arith.constant 0 : index
    %14 = vector.load %arg4[%c0_5, %c0_6] : memref<8x128xf32, #tpu.memory_space<vmem>>, vector<8x128xf32>
    %15 = vector.shape_cast %13 : vector<16x128xf32> to vector<2x8x128xf32>
    %cst_7 = arith.constant dense<0.000000e+00> : vector<8x128xf32>
    %16 = vector.multi_reduction <add>, %15, %cst_7 [0] : vector<2x8x128xf32> to vector<8x128xf32>
    %17 = arith.addf %14, %16 : vector<8x128xf32>
    %c0_8 = arith.constant 0 : index
    %c0_9 = arith.constant 0 : index
    %18 = vector.load %arg4[%c0_8, %c0_9] : memref<8x128xf32, #tpu.memory_space<vmem>>, vector<8x128xf32>
    tpu.vector_store %arg4[%c0_8, %c0_9], %17 {strides = array<i32>} : memref<8x128xf32, #tpu.memory_space<vmem>>, vector<8x128xf32>,
    %c0_i32_10 = arith.constant 0 : i32
    %19 = arith.cmpi eq, %arg1, %c0_i32_10 : i32
    %20 = arith.extui %19 : i1 to i32
    %c0_i32_11 = arith.constant 0 : i32
    %21 = arith.cmpi ne, %20, %c0_i32_11 : i32
    scf.if %21 {
      %c0_12 = arith.constant 0 : index
      %c0_13 = arith.constant 0 : index
      %22 = vector.load %arg4[%c0_12, %c0_13] : memref<8x128xf32, #tpu.memory_space<vmem>>, vector<8x128xf32>
      %23 = vector.shape_cast %22 : vector<8x128xf32> to vector<1x8x128xf32>
      %c0_14 = arith.constant 0 : index
      %c0_15 = arith.constant 0 : index
      %c0_16 = arith.constant 0 : index
      %24 = vector.load %arg3[%c0_14, %c0_15, %c0_16] : memref<1x8x128xf32, #tpu.memory_space<vmem>>, vector<1x8x128xf32>
      tpu.vector_store %arg3[%c0_14, %c0_15, %c0_16], %23 {strides = array<i32>} : memref<1x8x128xf32, #tpu.memory_space<vmem>>, vector<1x8x128xf32>,
    } else {
    }
    return
  }
  func.func @transform_0(%arg0: i32, %arg1: i32) -> (i32, i32) {
    %c1_i32 = arith.constant 1 : i32
    %0 = arith.muli %arg0, %c1_i32 : i32
    %1 = arith.addi %0, %arg1 : i32
    %c0_i32 = arith.constant 0 : i32
    %2 = arith.minsi %1, %c0_i32 : i32
    %c0_i32_0 = arith.constant 0 : i32
    %c0_i32_1 = arith.constant 0 : i32
    return %2, %c0_i32_0 : i32, i32
  }
  func.func @transform_1(%arg0: i32, %arg1: i32) -> (i32, i32, i32) {
    %c0_i32 = arith.constant 0 : i32
    %c0_i32_0 = arith.constant 0 : i32
    %c0_i32_1 = arith.constant 0 : i32
    return %arg0, %c0_i32, %c0_i32_0 : i32, i32, i32
  }
}

</mosaic_0001>

<llo_original>
// kernel: adv_loss.1
$region0: #{adv_loss.1}
  #allocation0 [shape = 'u32[]', space=smem, size = 0x4, offset = 0x4, fixed_abs, tag = 'smem constant byte address 0x4 - core index']
  #allocation1 [shape = 'u32[144,128]{1,0:T(1,128)}', space=vmem, size = 0x12000, scoped, tag = 'internal scratch']
  #allocation2 [shape = 'f32[8,128]{1,0:T(8,128)}', space=vmem, size = 0x1000, scoped, tag = 'scratch operand']
  %s0 = inlined_call_operand.vmem [shape: f32[16,128], index: 0, kind: input, shape index: {}]
  %s1 = inlined_call_operand.vmem [shape: f32[1,8,128], index: 1, kind: output, shape index: {}]
  %s2 = sld [smem:[#allocation0]]
  $region22: #{adv_loss.1} parent=0
    _
  %s4 = ssub.s32 1, %s2
  %s5 = scalar_select 0, %s4, %s2
  // Predicated region
  $region2: #{adv_loss.1} parent=0 // pred_check
    _
  $region3: #{adv_loss.1} parent=0 // pred_check_branch
    %7 = sbr.rel (0) target = $region5
  $region4: #{adv_loss.1} parent=0 // pred_region
    %s8 = sadd.s32 0, 0
    %p9 = scmp.lt.s32.totalorder %s8, 0
    %s10 = scalar_select %p9, %s8, 0
    %s11 = smul.u32 2, %s10
    %p12 = scmp.lt.s32.totalorder %s11, 1
    %s13 = scalar_select %p12, %s11, 1
    %s14 = smul.addr %s13, 8
    %s15 = scalar_lea.vmem %s0, %s14
    %s16 = sadd.s32 0, 0
    %p17 = scmp.lt.s32.totalorder %s16, 0
    %s18 = scalar_select %p17, %s16, 0
    %s19 = smul.u32 2, %s18
  $region5: #{adv_loss.1} parent=0 // pred_fallthru
    _
  %s20 = sadd.s32 0, 0
  %p21 = scmp.lt.s32.totalorder %s20, 0
  %s22 = scalar_select %p21, %s20, 0
  %s23 = smul.u32 2, %s22
  %p24 = scmp.lt.s32.totalorder %s23, 1
  %s25 = scalar_select %p24, %s23, 1
  %s26 = smul.addr %s25, 8
  %s27 = scalar_lea.vmem %s0, %s26
  %s28 = sadd.s32 0, 0
  %p29 = scmp.lt.s32.totalorder %s28, 0
  %s30 = scalar_select %p29, %s28, 0
  %s31 = smul.u32 2, %s30
  %p32 = scmp.lt.s32.totalorder %s31, 1
  %s33 = scalar_select %p32, %s31, 1
  %s34 = smul.addr %s33, 8
  %s35 = scalar_lea.vmem %s0, %s34
  %s36 = sadd.s32 0, 0
  %p37 = scmp.lt.s32.totalorder %s36, 0
  %s38 = scalar_select %p37, %s36, 0
  %s39 = smul.u32 2, %s38
  %p40 = scmp.eq.s32.totalorder 0, 0
  // Predicated region
  $region6: #{adv_loss.1} parent=0 // pred_check
    %p41 = pneg %p40
  $region7: #{adv_loss.1} parent=0 // pred_check_branch
    %43 = sbr.rel (%p41) target = $region9
  $region8: #{adv_loss.1} parent=0 // pred_region
    %44 = vst [vmem:[#allocation2] sm:$0xff] 0.0
  $region9: #{adv_loss.1} parent=0 // pred_fallthru
    _
  %v45 = vld [vmem:[%s35] sm:$0xff]
  %v46 = vld [vmem:[%s35 + $0x8] sm:$0xff]
  %v47 = vmul.f32 %v45, 0.5
  %v48 = vmul.f32 %v46, 0.5
  %v49 = vtanh.pop %v47
  %v50 = vtanh.pop %v48
  %v51 = vmul.f32 %v49, 0.5
  %v52 = vmul.f32 %v50, 0.5
  %v53 = vadd.f32 %v51, 0.5
  %v54 = vadd.f32 %v52, 0.5
  %v55 = vadd.f32 %v53, 1e-09
  %v56 = vadd.f32 %v54, 1e-09
  %v57 = vlog2.pop %v55
  %v58 = vmul.f32 %v57, 0.6931472
  %v59 = vlog2.pop %v56
  %v60 = vmul.f32 %v59, 0.6931472
  %v61 = vld [vmem:[#allocation2] sm:$0xff]
  %v62 = vadd.f32 %v58, %v60
  %v63 = vadd.f32 %v61, %v62
  %64 = vst [vmem:[#allocation2] sm:$0xff] %v63
  // Predicated region
  $region10: #{adv_loss.1} parent=0 // pred_check
    %p65 = pneg %p40
  $region11: #{adv_loss.1} parent=0 // pred_check_branch
    %67 = sbr.rel (%p65) target = $region13
  $region12: #{adv_loss.1} parent=0 // pred_region
    %v68 = vld [vmem:[#allocation2] sm:$0xff]
    %69 = vst [vmem:[%s1] sm:$0xff] %v68
  $region13: #{adv_loss.1} parent=0 // pred_fallthru
    _
  // Predicated region
  $region14: #{adv_loss.1} parent=0 // pred_check
    _
  $region15: #{adv_loss.1} parent=0 // pred_check_branch
    %71 = sbr.rel (0) target = $region17
  $region16: #{adv_loss.1} parent=0 // pred_region
    _
  $region17: #{adv_loss.1} parent=0 // pred_fallthru
    _
  // Predicated region
  $region18: #{adv_loss.1} parent=0 // pred_check
    _
  $region19: #{adv_loss.1} parent=0 // pred_check_branch
    %73 = sbr.rel (0) target = $region21
  $region20: #{adv_loss.1} parent=0 // pred_region
    _
  $region21: #{adv_loss.1} parent=0 // pred_fallthru
    _

</llo_original>
